<compile_context>
chip_gen: v6e
topology: v6e:2x2x1
jax: 0.10.0
libtpu: 0.0.40
codegen_flags: <defaults>
</compile_context>

<pallas_src>
import functools

import jax
import jax.numpy as jnp
from jax.experimental import pallas as pl
from jax.experimental.pallas import tpu as pltpu

_LANE = 128
_MAX_BLOCK_BYTES = 8 * 1024 * 1024   # per-pipelined-block target (~6-8 MiB)
_MIN_BLOCK_BYTES = 512 * 1024


def _round_up(v, m):
    return (v + m - 1) // m * m


def _vmem_limit_bytes():
    """Generation-aware scoped-VMEM limit: 64 MiB on v5e/v6e, 48 MiB on v7x."""
    cap = None
    try:
        cap = getattr(pltpu.get_tpu_info(), "vmem_capacity_bytes", None)
    except Exception:
        cap = None
    if not cap:
        cap = 64 * 1024 * 1024           # conservative default (v7x-sized VMEM)
    return min(cap * 3 // 4, 64 * 1024 * 1024)


def _const_operand_spec(shape, index_map, nbytes):
    """Single-buffer a grid-constant operand when it is large enough to matter."""
    if nbytes >= (1 << 20):
        try:
            return pl.BlockSpec(shape, index_map, pipeline_mode=pl.Buffered(1))
        except Exception:
            pass
    return pl.BlockSpec(shape, index_map)


def _pick_batch_tile(bs, c_in, itemsize, budget_bytes):
    """Phase-A batch rows per grid step.

    Guarantees >= 2 batch grid steps whenever bs > 8 (so v7x can shard the
    'parallel' batch axis across both TensorCores), keeps tiles a multiple of 8,
    and respects the per-block byte budget for the minimal 128-lane x block.
    """
    if bs <= 8:
        return bs                                       # one full-dim block
    b_tile = min(128, _round_up(pl.cdiv(bs, 2), 8))     # >= 2 steps
    cap = (budget_bytes // (c_in * _LANE * itemsize)) // 8 * 8
    if cap >= 8:
        b_tile = min(b_tile, cap)
    # TODO(synk): for very large C_in (>~4k fp32 channels) the minimal
    # (8, C_in, 128) block can still exceed the budget; C_in should then be
    # tiled with a partial-matmul accumulator.
    return max(8, b_tile)


def _pick_spatial_tile(hw, per_lane_bytes, budget_bytes):
    """Lane-dense spatial tile: full H*W if it fits the budget, else a 128 multiple."""
    if hw * per_lane_bytes <= budget_bytes:
        return hw
    return max(_LANE, (budget_bytes // per_lane_bytes) // _LANE * _LANE)


def _pool_matmul_kernel(x_ref, w_ref, b_ref, z_ref, acc_ref, *, hw, hw_tile):
    # x_ref: (B_TILE, C_in, HW_TILE)   lane-dense spatial slab
    # w_ref: (C_in, C_out)             conv weight with BN scale and 1/HW folded in
    # b_ref: (1, C_out)                folded BN bias
    # z_ref: (B_TILE, C_out)           output, already in the final output dtype
    # acc_ref: VMEM (B_TILE, C_in) fp32 running spatial sum
    s = pl.program_id(1)

    @pl.when(s == 0)
    def _():
        acc_ref[...] = jnp.zeros_like(acc_ref)

    x = x_ref[...].astype(jnp.float32)
    if hw % hw_tile != 0:
        # Ragged last spatial tile: mask lanes past the true extent in-kernel
        # instead of padding x in HBM (avoids a full extra read of the input).
        valid = hw - s * hw_tile
        lane = jax.lax.broadcasted_iota(jnp.int32, x.shape, 2)
        x = jnp.where(lane < valid, x, 0.0)
    # Partial sum over the lane-dense spatial axis; HBM-read bound, the XLU
    # reduce hides under the DMA.  (MXU ones-vector contraction is a possible
    # follow-up if a profile ever shows it exposed.)
    acc_ref[...] += jnp.sum(x, axis=2)

    @pl.when(s == pl.num_programs(1) - 1)
    def _():
        # 1/HW and the BN scale are folded into w_ref; BN shift is b_ref.
        z = jnp.dot(acc_ref[...], w_ref[...], preferred_element_type=jnp.float32)
        z_ref[...] = jnp.maximum(z + b_ref[...], 0.0).astype(z_ref.dtype)


def _broadcast_kernel(z_ref, o_ref):
    # z_ref: (B_TILE, C_out) already in output dtype -> no per-element cast on
    # the big broadcast slab; o_ref: (B_TILE, C_out, HW_TILE) lane-dense store.
    o_ref[...] = jnp.broadcast_to(z_ref[...][:, :, None], o_ref.shape)


def psp3_pooling(x, conv_weight, gamma, beta, running_mean, running_var, eps=1e-5):
    """x: (bs, C_in, H, W); conv_weight: (C_out, C_in) [1x1 conv squeezed]."""
    bs, c_in, h, w = x.shape
    c_out = conv_weight.shape[0]
    hw = h * w
    out_dtype = x.dtype
    in_itemsize = jnp.dtype(x.dtype).itemsize
    out_itemsize = jnp.dtype(out_dtype).itemsize

    # Fold eval-mode BatchNorm and the 1/(H*W) of the average pool into the
    # 1x1 conv weight and a bias.
    scale = gamma.astype(jnp.float32) * jax.lax.rsqrt(
        running_var.astype(jnp.float32) + eps)
    w_folded = (conv_weight.astype(jnp.float32).T * scale[None, :]) * (1.0 / hw)
    bias = (beta.astype(jnp.float32)
            - running_mean.astype(jnp.float32) * scale).reshape(1, c_out)

    # Lane-dense layout: flatten spatial dims onto the 128-wide lane axis.
    # No padding / slicing: edge blocks are clamped by Pallas and the reduction
    # tail is masked in-kernel.
    x_flat = x.reshape(bs, c_in, hw)

    vmem_limit = _vmem_limit_bytes()
    fixed_a = (c_in * c_out + c_out) * 4                      # fp32 weight + bias
    budget_a = min(_MAX_BLOCK_BYTES,
                   max(_MIN_BLOCK_BYTES, (vmem_limit - 2 * fixed_a) // 4))
    budget_b = min(_MAX_BLOCK_BYTES, max(_MIN_BLOCK_BYTES, vmem_limit // 4))

    # ---- Phase A: spatial reduction + folded 1x1 conv + ReLU -> z (bs, C_out).
    b_tile_a = _pick_batch_tile(bs, c_in, in_itemsize, budget_a)
    hw_tile_a = _pick_spatial_tile(hw, b_tile_a * c_in * in_itemsize, budget_a)

    kernel_a = functools.partial(_pool_matmul_kernel, hw=hw, hw_tile=hw_tile_a)
    z = pl.pallas_call(
        kernel_a,
        out_shape=jax.ShapeDtypeStruct((bs, c_out), out_dtype),
        grid_spec=pltpu.PrefetchScalarGridSpec(
            num_scalar_prefetch=0,
            grid=(pl.cdiv(bs, b_tile_a), pl.cdiv(hw, hw_tile_a)),
            in_specs=[
                pl.BlockSpec((b_tile_a, c_in, hw_tile_a), lambda b, s: (b, 0, s)),
                _const_operand_spec((c_in, c_out), lambda b, s: (0, 0),
                                    c_in * c_out * 4),
                _const_operand_spec((1, c_out), lambda b, s: (0, 0), c_out * 4),
            ],
            out_specs=pl.BlockSpec((b_tile_a, c_out), lambda b, s: (b, 0)),
            scratch_shapes=[pltpu.VMEM((b_tile_a, c_in), jnp.float32)],
        ),
        compiler_params=pltpu.CompilerParams(
            dimension_semantics=("parallel", "arbitrary"),
            vmem_limit_bytes=vmem_limit,
        ),
    )(x_flat, w_folded, bias)

    # ---- Phase B: pure lane-dense broadcast of z -> (bs, C_out, H*W).
    # Small batch tile decoupled from phase A; widest spatial tile the budget
    # allows (output lane-width is the dominant store-path lever).
    b_tile_b = min(bs, 8)
    hw_tile_b = _pick_spatial_tile(hw, b_tile_b * c_out * out_itemsize, budget_b)

    out_flat = pl.pallas_call(
        _broadcast_kernel,
        out_shape=jax.ShapeDtypeStruct((bs, c_out, hw), out_dtype),
        grid_spec=pltpu.PrefetchScalarGridSpec(
            num_scalar_prefetch=0,
            grid=(pl.cdiv(bs, b_tile_b), pl.cdiv(hw, hw_tile_b)),
            in_specs=[pl.BlockSpec((b_tile_b, c_out), lambda b, s: (b, 0))],
            out_specs=pl.BlockSpec((b_tile_b, c_out, hw_tile_b),
                                   lambda b, s: (b, 0, s)),
        ),
        compiler_params=pltpu.CompilerParams(
            dimension_semantics=("parallel", "parallel"),
            vmem_limit_bytes=vmem_limit,
        ),
    )(z)

    return out_flat.reshape(bs, c_out, h, w)


def psp3_pooling_ref(x, conv_weight, gamma, beta, running_mean, running_var,
                     eps=1e-5):
    """Pure-JAX reference (mirrors PyTorch eval-mode forward)."""
    bs, _, h, w = x.shape
    pooled = jnp.mean(x.astype(jnp.float32), axis=(2, 3))          # (bs, C_in)
    z = pooled @ conv_weight.astype(jnp.float32).T                 # (bs, C_out)
    z = gamma * (z - running_mean) * jax.lax.rsqrt(running_var + eps) + beta
    z = jnp.maximum(z, 0.0)
    return jnp.broadcast_to(z[:, :, None, None],
                            (bs, z.shape[1], h, w)).astype(x.dtype)


def _run_case(key, bs, c_in, c_out, h, w):
    kx, kw, kg, kb, km, kv = jax.random.split(key, 6)
    x = jax.random.normal(kx, (bs, c_in, h, w), dtype=jnp.float32)
    conv_weight = jax.random.normal(kw, (c_out, c_in), dtype=jnp.float32) * 0.1
    gamma = 1.0 + 0.1 * jax.random.normal(kg, (c_out,), dtype=jnp.float32)
    beta = 0.05 * jax.random.normal(kb, (c_out,), dtype=jnp.float32)
    running_mean = 0.1 * jax.random.normal(km, (c_out,), dtype=jnp.float32)
    running_var = 0.5 + jnp.abs(jax.random.normal(kv, (c_out,), dtype=jnp.float32))

    out = psp3_pooling(x, conv_weight, gamma, beta, running_mean, running_var)
    out = jax.block_until_ready(out)
    ref = psp3_pooling_ref(x, conv_weight, gamma, beta, running_mean, running_var)
    assert out.shape == (bs, c_out, h, w)
    assert out.dtype == x.dtype
    assert jnp.allclose(out, ref, atol=2e-5, rtol=1e-4), (
        float(jnp.max(jnp.abs(out - ref))))


if __name__ == "__main__":
    key = jax.random.PRNGKey(0)
    k0, k1 = jax.random.split(key)
    # Primary small case (module-consistent shapes).
    _run_case(k0, bs=2, c_in=4, c_out=8, h=16, w=16)
    # Batch not divisible by the tile: exercises the no-pad edge-block path.
    _run_case(k1, bs=10, c_in=4, c_out=8, h=16, w=16)
    print("KERNEL_OK")
</pallas_src>

<mosaic_0001>
module attributes {stable_mosaic.version = 11 : i64} {
  func.func @_pool_matmul_kernel(%arg0: i32, %arg1: i32, %arg2: memref<2x4x256xf32, #tpu.memory_space<vmem>>, %arg3: memref<4x8xf32, #tpu.memory_space<vmem>>, %arg4: memref<1x8xf32, #tpu.memory_space<vmem>>, %arg5: memref<2x8xf32, #tpu.memory_space<vmem>>, %arg6: memref<2x4xf32, #tpu.memory_space<vmem>>) attributes {dimension_semantics = [#tpu.dimension_semantics<parallel>, #tpu.dimension_semantics<arbitrary>], iteration_bounds = array<i64: 1, 1>, scalar_prefetch = 0 : i64, scratch_operands = 1 : i64, tpu.core_type = #tpu.core_type<tc>, window_params = [{transform_indices = @transform_0, window_bounds = array<i64: 2, 4, 256>}, {pipeline_mode = #tpu.pipeline_mode<synchronous>, transform_indices = @transform_1, window_bounds = array<i64: 4, 8>}, {pipeline_mode = #tpu.pipeline_mode<synchronous>, transform_indices = @transform_2, window_bounds = array<i64: 1, 8>}, {transform_indices = @transform_3, window_bounds = array<i64: 2, 8>}]} {
    %c0_i32 = arith.constant 0 : i32
    %0 = arith.cmpi eq, %arg1, %c0_i32 : i32
    %1 = arith.extui %0 : i1 to i32
    %c0_i32_0 = arith.constant 0 : i32
    %2 = arith.cmpi ne, %1, %c0_i32_0 : i32
    scf.if %2 {
      %cst_9 = arith.constant 0.000000e+00 : f32
      %11 = vector.broadcast %cst_9 : f32 to vector<2x4xf32>
      %c0_10 = arith.constant 0 : index
      %c0_11 = arith.constant 0 : index
      %12 = vector.load %arg6[%c0_10, %c0_11] : memref<2x4xf32, #tpu.memory_space<vmem>>, vector<2x4xf32>
      tpu.vector_store %arg6[%c0_10, %c0_11], %11 {strides = array<i32>} : memref<2x4xf32, #tpu.memory_space<vmem>>, vector<2x4xf32>,
    } else {
    }
    %c0 = arith.constant 0 : index
    %c0_1 = arith.constant 0 : index
    %c0_2 = arith.constant 0 : index
    %3 = vector.load %arg2[%c0, %c0_1, %c0_2] : memref<2x4x256xf32, #tpu.memory_space<vmem>>, vector<2x4x256xf32>
    %c0_3 = arith.constant 0 : index
    %c0_4 = arith.constant 0 : index
    %4 = vector.load %arg6[%c0_3, %c0_4] : memref<2x4xf32, #tpu.memory_space<vmem>>, vector<2x4xf32>
    %cst = arith.constant dense<0.000000e+00> : vector<2x4xf32>
    %5 = vector.multi_reduction <add>, %3, %cst [2] : vector<2x4x256xf32> to vector<2x4xf32>
    %6 = arith.addf %4, %5 : vector<2x4xf32>
    %c0_5 = arith.constant 0 : index
    %c0_6 = arith.constant 0 : index
    %7 = vector.load %arg6[%c0_5, %c0_6] : memref<2x4xf32, #tpu.memory_space<vmem>>, vector<2x4xf32>
    tpu.vector_store %arg6[%c0_5, %c0_6], %6 {strides = array<i32>} : memref<2x4xf32, #tpu.memory_space<vmem>>, vector<2x4xf32>,
    %c0_i32_7 = arith.constant 0 : i32
    %8 = arith.cmpi eq, %arg1, %c0_i32_7 : i32
    %9 = arith.extui %8 : i1 to i32
    %c0_i32_8 = arith.constant 0 : i32
    %10 = arith.cmpi ne, %9, %c0_i32_8 : i32
    scf.if %10 {
      %c0_9 = arith.constant 0 : index
      %c0_10 = arith.constant 0 : index
      %11 = vector.load %arg6[%c0_9, %c0_10] : memref<2x4xf32, #tpu.memory_space<vmem>>, vector<2x4xf32>
      %c0_11 = arith.constant 0 : index
      %c0_12 = arith.constant 0 : index
      %12 = vector.load %arg3[%c0_11, %c0_12] : memref<4x8xf32, #tpu.memory_space<vmem>>, vector<4x8xf32>
      %cst_13 = arith.constant dense<0.000000e+00> : vector<2x8xf32>
      %13 = tpu.matmul %11, %12, %cst_13 {dimension_numbers = #tpu.dot_dimension_numbers<[1], [0], [0], [1], [0, 0, 1, 1], [], []>} : vector<2x4xf32>, vector<4x8xf32>, vector<2x8xf32> -> vector<2x8xf32>
      %c0_14 = arith.constant 0 : index
      %c0_15 = arith.constant 0 : index
      %14 = vector.load %arg4[%c0_14, %c0_15] : memref<1x8xf32, #tpu.memory_space<vmem>>, vector<1x8xf32>
      %15 = vector.broadcast %14 : vector<1x8xf32> to vector<2x8xf32>
      %16 = arith.addf %13, %15 : vector<2x8xf32>
      %cst_16 = arith.constant 0.000000e+00 : f32
      %17 = vector.broadcast %cst_16 : f32 to vector<2x8xf32>
      %18 = arith.maximumf %16, %17 : vector<2x8xf32>
      %c0_17 = arith.constant 0 : index
      %c0_18 = arith.constant 0 : index
      %19 = vector.load %arg5[%c0_17, %c0_18] : memref<2x8xf32, #tpu.memory_space<vmem>>, vector<2x8xf32>
      tpu.vector_store %arg5[%c0_17, %c0_18], %18 {strides = array<i32>} : memref<2x8xf32, #tpu.memory_space<vmem>>, vector<2x8xf32>,
    } else {
    }
    return
  }
  func.func @transform_0(%arg0: i32, %arg1: i32) -> (i32, i32, i32) {
    %c0_i32 = arith.constant 0 : i32
    %c0_i32_0 = arith.constant 0 : i32
    return %arg0, %c0_i32, %arg1 : i32, i32, i32
  }
  func.func @transform_1(%arg0: i32, %arg1: i32) -> (i32, i32) {
    %c0_i32 = arith.constant 0 : i32
    %c0_i32_0 = arith.constant 0 : i32
    %c0_i32_1 = arith.constant 0 : i32
    return %c0_i32, %c0_i32_0 : i32, i32
  }
  func.func @transform_2(%arg0: i32, %arg1: i32) -> (i32, i32) {
    %c0_i32 = arith.constant 0 : i32
    %c0_i32_0 = arith.constant 0 : i32
    %c0_i32_1 = arith.constant 0 : i32
    return %c0_i32, %c0_i32_0 : i32, i32
  }
  func.func @transform_3(%arg0: i32, %arg1: i32) -> (i32, i32) {
    %c0_i32 = arith.constant 0 : i32
    %c0_i32_0 = arith.constant 0 : i32
    return %arg0, %c0_i32 : i32, i32
  }
}

</mosaic_0001>

<llo_original>
// kernel: tpu_custom_call.1
$region0: #{tpu_custom_call.1}
  #allocation0 [shape = 'u32[]', space=smem, size = 0x4, offset = 0x4, fixed_abs, tag = 'smem constant byte address 0x4 - core index']
  #allocation1 [shape = 'u32[144,128]{1,0:T(1,128)}', space=vmem, size = 0x12000, scoped, tag = 'internal scratch']
  #allocation2 [shape = 'f32[2,4]{1,0:T(2,128)}', space=vmem, size = 0x400, scoped, tag = 'scratch operand']
  %s0 = inlined_call_operand.hbm [shape: f32[2,4,256], index: 0, kind: input, shape index: {}]
  %s1 = inlined_call_operand.hbm [shape: f32[4,8], index: 1, kind: input, shape index: {}]
  %s2 = inlined_call_operand.vmem [shape: f32[1,8], index: 2, kind: input, shape index: {}]
  %s3 = inlined_call_operand.hbm [shape: f32[2,8], index: 3, kind: output, shape index: {}]
  %s4 = sld [smem:[#allocation0]]
  $region38: #{tpu_custom_call.1} parent=0
    _
  %s6 = ssub.s32 1, %s4
  %s7 = scalar_select 0, %s6, %s4
  $region1: #{tpu_custom_call.1} parent=0
    #allocation3 [shape = 'u8[8192]{0}', space=vmem, size = 0x2000, scoped, tag = 'input window, operand 0, single buffered']
    #allocation4 [shape = 's32[1]{0}', space=sflag, size = 0x4, scoped, tag = 'scoped memory for tpu_custom_call.1']
    #allocation5 [shape = 's32[1]{0}', space=sflag, size = 0x4, scoped, tag = 'scoped memory for tpu_custom_call.1']
    #allocation6 [shape = 'u8[2048]{0}', space=vmem, size = 0x800, scoped, tag = 'input window, operand 1, single buffered']
    #allocation7 [shape = 's32[1]{0}', space=sflag, size = 0x4, scoped, tag = 'scoped memory for tpu_custom_call.1']
    #allocation8 [shape = 'u8[1024]{0}', space=vmem, size = 0x400, scoped, tag = 'output window, operand 0, single buffered']
    %8 = vsyncpa [#allocation4], 0
    %9 = vsyncpa [#allocation7], 0
    %10 = vsyncpa [#allocation5], 0
    // Predicated region
    $region2: #{tpu_custom_call.1} parent=1 // pred_check
      _
    $region3: #{tpu_custom_call.1} parent=1 // pred_check_branch
      %12 = sbr.rel (0) target = $region5
    $region4: #{tpu_custom_call.1} parent=1 // pred_region
      %s14 = ssub.s32 256, 256
      %15 = vsyncadd [#allocation4], %s14
      %s16 = sshll.u32 [#allocation3], 4
      %s17 = int_to_ptr.vmem [resolvable:$true] %s16
      %22 = dma.hbm_to_vmem [thread:$0]  %s0, 256, %s17, [#allocation4], 128, 128, 8
    $region5: #{tpu_custom_call.1} parent=1 // pred_fallthru
      _
    // Predicated region
    $region6: #{tpu_custom_call.1} parent=1 // pred_check
      _
    $region7: #{tpu_custom_call.1} parent=1 // pred_check_branch
      %24 = sbr.rel (0) target = $region9
    $region8: #{tpu_custom_call.1} parent=1 // pred_region
      %s26 = ssub.s32 64, 64
      %27 = vsyncadd [#allocation7], %s26
      %s29 = sshll.u32 [#allocation6], 4
      %s30 = int_to_ptr.vmem [resolvable:$true] %s29
      %32 = dma.hbm_to_vmem [thread:$0]  %s1, 64, %s30, [#allocation7]
    $region9: #{tpu_custom_call.1} parent=1 // pred_fallthru
      _
    // Predicated region
    $region10: #{tpu_custom_call.1} parent=1 // pred_check
      _
    $region11: #{tpu_custom_call.1} parent=1 // pred_check_branch
      %34 = sbr.rel (0) target = $region13
    $region12: #{tpu_custom_call.1} parent=1 // pred_region
      _
    $region13: #{tpu_custom_call.1} parent=1 // pred_fallthru
      _
    // Predicated region
    $region14: #{tpu_custom_call.1} parent=1 // pred_check
      _
    $region15: #{tpu_custom_call.1} parent=1 // pred_check_branch
      %36 = sbr.rel (0) target = $region17
    $region16: #{tpu_custom_call.1} parent=1 // pred_region
      %37 = dma.done [#allocation4], 256
    $region17: #{tpu_custom_call.1} parent=1 // pred_fallthru
      _
    // Predicated region
    $region18: #{tpu_custom_call.1} parent=1 // pred_check
      _
    $region19: #{tpu_custom_call.1} parent=1 // pred_check_branch
      %39 = sbr.rel (0) target = $region21
    $region20: #{tpu_custom_call.1} parent=1 // pred_region
      %40 = dma.done [#allocation7], 64
    $region21: #{tpu_custom_call.1} parent=1 // pred_fallthru
      _
    %p41 = scmp.eq.s32.totalorder 0, 0
    // Predicated region
    $region22: #{tpu_custom_call.1} parent=1 // pred_check
      %p42 = pneg %p41
    $region23: #{tpu_custom_call.1} parent=1 // pred_check_branch
      %44 = sbr.rel (%p42) target = $region25
    $region24: #{tpu_custom_call.1} parent=1 // pred_region
      %vm45 = vcmask 25600
      %46 = vst.msk [vmem:[#allocation2] sm:$0x3] %vm45, 0.0
    $region25: #{tpu_custom_call.1} parent=1 // pred_fallthru
      _
    %v47 = vld [vmem:[#allocation3] sm:$0xff]
    %v48 = vld [vmem:[#allocation3 + $0x8] sm:$0xff]
    %v49 = vld [vmem:[#allocation2] sm:$0x3]
    %v52 = vcombine.high %v47, %v47
    %v53 = vcombine.high %v48, %v48
    %vm56 = vcmask 1043456
    %v57 = vsel %vm56, %v47, 0.0
    %v58 = vsel %vm56, %v52, 0.0
    %v59 = vadd.f32 %v57, %v58
    %60 = vadd.xlane.f32.xlu0 %v59
    %v61 = vpop.xlane.xlu0 %60
    %v62 = vsel %vm56, %v48, 0.0
    %v63 = vsel %vm56, %v53, 0.0
    %v64 = vadd.f32 %v62, %v63
    %65 = vadd.xlane.f32.xlu0 %v64
    %v66 = vpop.xlane.xlu0 %65
    %v69 = vlaneseq
    %v70 = vand.u32 %v69, 127
    %v71 = vlaneseq
    %v72 = vshrl.u32 %v71, 7
    %v73 = vsub.s32 %v70, %v72
    %v74 = vrot.slane %v61, %v73
    %v75 = vlaneseq
    %v76 = vshrl.u32 %v75, 7
    %v77 = vsub.s32 %v70, %v76
    %v78 = vrot.slane %v66, %v77
    %vm79 = vcmask 1041409
    %v80 = vsel %vm79, %v78, %v74
    %v82 = vadd.f32 %v49, %v80
    %vm83 = vcmask 25600
    %84 = vst.msk [vmem:[#allocation2] sm:$0x3] %vm83, %v82
    // Predicated region
    $region26: #{tpu_custom_call.1} parent=1 // pred_check
      %p85 = pneg %p41
    $region27: #{tpu_custom_call.1} parent=1 // pred_check_branch
      %87 = sbr.rel (%p85) target = $region29
    $region28: #{tpu_custom_call.1} parent=1 // pred_region
      %v88 = vld [vmem:[#allocation2] sm:$0x3]
      %v89 = vld [vmem:[#allocation6] sm:$0xf]
      %v90 = vld [vmem:[%s2] sm:$0x1]
      %v92 = vlaneseq
      %v93 = vshrl.u32 %v92, 7
      %v94 = vsub.s32 0, %v93
      %v95 = vrot.slane %v90, %v94
      %vm97 = vcmask 31744
      %v99 = vsel %vm97, %v88, 0
      %v102 = vsel %vm56, %v89, 0
      %104 = vmatprep.subr.mxu0 0.0
      %105 = vmatpush1.msra.mxu0 0.0
      %106 = vmatprep.subr.mxu0 0.0
      %107 = vmatpush1.msra.mxu0 0.0
      %108 = vmatprep.subr.mxu0 0.0
      %109 = vmatpush1.msra.mxu0 0.0
      %110 = vmatprep.subr.mxu0 0.0
      %111 = vmatpush1.msra.mxu0 0.0
      %112 = vmatprep.subr.mxu0 0.0
      %113 = vmatpush1.msra.mxu0 0.0
      %114 = vmatprep.subr.mxu0 0.0
      %115 = vmatpush1.msra.mxu0 0.0
      %116 = vmatprep.subr.mxu0 0.0
      %117 = vmatpush1.msra.mxu0 0.0
      %118 = vmatprep.subr.mxu0 0.0
      %119 = vmatpush1.msra.mxu0 0.0
      %120 = vmatprep.subr.mxu0 0.0
      %121 = vmatpush1.msra.mxu0 0.0
      %122 = vmatprep.subr.mxu0 0.0
      %123 = vmatpush1.msra.mxu0 0.0
      %124 = vmatprep.subr.mxu0 0.0
      %125 = vmatpush1.msra.mxu0 0.0
      %126 = vmatprep.subr.mxu0 0.0
      %127 = vmatpush1.msra.mxu0 0.0
      %128 = vmatprep.subr.mxu0 0.0
      %129 = vmatpush1.msra.mxu0 0.0
      %130 = vmatprep.subr.mxu0 0.0
      %131 = vmatpush1.msra.mxu0 0.0
      %132 = vmatprep.subr.mxu0 0.0
      %133 = vmatpush1.msra.mxu0 0.0
      %134 = vmatprep.subr.mxu0 0.0
      %135 = vmatpush1.msra.mxu0 %v102
      %136 = vmatprep.subr.mxu0 0.0
      %137 = vmatpush2.msra.mxu0 0.0
      %138 = vmatprep.subr.mxu0 0.0
      %139 = vmatpush2.msra.mxu0 0.0
      %140 = vmatprep.subr.mxu0 0.0
      %141 = vmatpush2.msra.mxu0 0.0
      %142 = vmatprep.subr.mxu0 0.0
      %143 = vmatpush2.msra.mxu0 0.0
      %144 = vmatprep.subr.mxu0 0.0
      %145 = vmatpush2.msra.mxu0 0.0
      %146 = vmatprep.subr.mxu0 0.0
      %147 = vmatpush2.msra.mxu0 0.0
      %148 = vmatprep.subr.mxu0 0.0
      %149 = vmatpush2.msra.mxu0 0.0
      %150 = vmatprep.subr.mxu0 0.0
      %151 = vmatpush2.msra.mxu0 0.0
      %152 = vmatprep.subr.mxu0 0.0
      %153 = vmatpush2.msra.mxu0 0.0
      %154 = vmatprep.subr.mxu0 0.0
      %155 = vmatpush2.msra.mxu0 0.0
      %156 = vmatprep.subr.mxu0 0.0
      %157 = vmatpush2.msra.mxu0 0.0
      %158 = vmatprep.subr.mxu0 0.0
      %159 = vmatpush2.msra.mxu0 0.0
      %160 = vmatprep.subr.mxu0 0.0
      %161 = vmatpush2.msra.mxu0 0.0
      %162 = vmatprep.subr.mxu0 0.0
      %163 = vmatpush2.msra.mxu0 0.0
      %164 = vmatprep.subr.mxu0 0.0
      %165 = vmatpush2.msra.mxu0 0.0
      %166 = vmatprep.subr.mxu0 0.0
      %167 = vmatpush2.msra.mxu0 0.0
      %168 = vmatprep.mubr.f32.mxu0 0.0
      %169 = vmatmul.mubr.f32.gmra.mxu0 %v99
      %v170 = vpop.f32.mrf.mxu0
      %v171 = vadd.f32 %v95, %v170
      %v172 = vpop.f32.mrf.mxu0
      %173 = vdwg.mxu0
      %v174 = vmax.f32 %v171, 0.0
      %vm175 = vcmask 58368
      %176 = vst.msk [vmem:[#allocation8] sm:$0x3] %vm175, %v174
    $region29: #{tpu_custom_call.1} parent=1 // pred_fallthru
      _
    // Predicated region
    $region30: #{tpu_custom_call.1} parent=1 // pred_check
      _
    $region31: #{tpu_custom_call.1} parent=1 // pred_check_branch
      %178 = sbr.rel (0) target = $region33
    $region32: #{tpu_custom_call.1} parent=1 // pred_region
      %s180 = ssub.s32 32, 32
      %181 = vsyncadd [#allocation5], %s180
      %s183 = sshll.u32 [#allocation8], 4
      %s184 = int_to_ptr.vmem [resolvable:$true] %s183
      %186 = dma.vmem_to_hbm [thread:$0]  %s184, 32, %s3, [#allocation5]
    $region33: #{tpu_custom_call.1} parent=1 // pred_fallthru
      _
    // Predicated region
    $region34: #{tpu_custom_call.1} parent=1 // pred_check
      _
    $region35: #{tpu_custom_call.1} parent=1 // pred_check_branch
      %188 = sbr.rel (0) target = $region37
    $region36: #{tpu_custom_call.1} parent=1 // pred_region
      %189 = dma.done [#allocation5], 32
    $region37: #{tpu_custom_call.1} parent=1 // pred_fallthru
      _
    %190 = vsyncpa [#allocation4], 1
    %191 = vsyncpa [#allocation7], 1
    %192 = vsyncpa [#allocation5], 1

</llo_original>
